<compile_context>
chip_gen: v6e
topology: v6e:2x2x1
jax: 0.10.0
libtpu: 0.0.40
codegen_flags: <defaults>
</compile_context>

<pallas_src>
import functools

import jax
import jax.numpy as jnp
from jax.experimental import pallas as pl
from jax.experimental.pallas import tpu as pltpu


def _mse_partial_kernel(p_ref, t_ref, o_ref, *, tile_rows, lanes, valid_rows,
                        needs_mask):
    """Per-grid-step partial sum of squared differences.

    Reduces the (tile_rows, lanes) tile to an (8, lanes) partial with pure VPU
    adds (sublane-split reshape + sum over the leading axis); no cross-lane
    work and no carried accumulator, so grid steps are independent.
    """
    d = p_ref[...].astype(jnp.float32) - t_ref[...].astype(jnp.float32)
    sq = d * d

    if needs_mask:
        # Only the partial last grid block can read out-of-bounds garbage rows;
        # zero them. (Zero-padded lane/sublane tails already contribute 0.)
        step = pl.program_id(0)
        row = jax.lax.broadcasted_iota(jnp.int32, (tile_rows, lanes), 0)
        sq = jnp.where(step * tile_rows + row < valid_rows, sq, 0.0)

    # (tile_rows, lanes) -> (tile_rows//8, 8, lanes) is a layout no-op; summing
    # over the leading axis is a chain of full-vreg adds (VPU only).
    o_ref[...] = sq.reshape(tile_rows // 8, 8, lanes).sum(axis=0)


def sigmoid_mae_loss(pred, target, *, block_rows=2048):
    """MSE loss (mean of squared error) over all elements via a Pallas TPU kernel."""
    assert pred.shape == target.shape, "pred/target shape mismatch"
    n = pred.size
    lanes = 128
    itemsize = jnp.dtype(pred.dtype).itemsize
    # Sublane multiple for the native dtype: f32 -> 8, bf16/f16 -> 16, int8 -> 32.
    mult = max(8, 32 // max(itemsize, 1))

    # Flatten in native dtype (free for contiguous arrays; no f32 upcast in HBM).
    p_flat = pred.reshape(-1)
    t_flat = target.reshape(-1)

    # Lane pad only for ragged n (padded zeros diff to 0 -> contribute nothing).
    lane_pad = (-n) % lanes
    if lane_pad:
        p_flat = jnp.pad(p_flat, (0, lane_pad))
        t_flat = jnp.pad(t_flat, (0, lane_pad))
    rows = (n + lane_pad) // lanes
    p2d = p_flat.reshape(rows, lanes)
    t2d = t_flat.reshape(rows, lanes)

    # Sublane-align the row count only when needed (zero rows contribute 0).
    row_pad = (-rows) % mult
    if row_pad:
        p2d = jnp.pad(p2d, ((0, row_pad), (0, 0)))
        t2d = jnp.pad(t2d, ((0, row_pad), (0, 0)))
    rows_aligned = rows + row_pad

    # Large, sublane-aligned tile; clamp to the slab height for small inputs.
    tile_rows = min(max((block_rows // mult) * mult, mult), rows_aligned)
    grid_size = pl.cdiv(rows_aligned, tile_rows)
    # Mask only if the last grid block hangs past the array (garbage rows).
    needs_mask = (grid_size * tile_rows != rows_aligned)

    kernel = functools.partial(
        _mse_partial_kernel,
        tile_rows=tile_rows,
        lanes=lanes,
        valid_rows=rows_aligned,
        needs_mask=needs_mask,
    )

    partials = pl.pallas_call(
        kernel,
        out_shape=jax.ShapeDtypeStruct((grid_size * 8, lanes), jnp.float32),
        grid_spec=pltpu.PrefetchScalarGridSpec(
            num_scalar_prefetch=0,
            grid=(grid_size,),
            in_specs=[
                pl.BlockSpec((tile_rows, lanes), lambda i: (i, 0)),
                pl.BlockSpec((tile_rows, lanes), lambda i: (i, 0)),
            ],
            out_specs=pl.BlockSpec((8, lanes), lambda i: (i, 0)),
        ),
        compiler_params=pltpu.CompilerParams(
            dimension_semantics=("parallel",),
        ),
    )(p2d, t2d)

    # Tiny final reduce over the (grid*8, 128) partials (<1% of input traffic).
    return jnp.sum(partials) / jnp.float32(n)


if __name__ == "__main__":
    key = jax.random.PRNGKey(0)
    k1, k2 = jax.random.split(key)
    # Small NCHW-shaped inputs consistent with typical usage of this loss.
    pred = jax.random.normal(k1, (2, 4, 16, 16), dtype=jnp.float32)
    target = jax.random.normal(k2, (2, 4, 16, 16), dtype=jnp.float32)

    loss = jax.block_until_ready(jax.jit(sigmoid_mae_loss)(pred, target))

    # Reference check (plain JAX) to confirm semantics match torch.nn.MSELoss.
    ref = jnp.mean((pred - target) ** 2)
    assert jnp.allclose(loss, ref, rtol=1e-5, atol=1e-6), (loss, ref)

    print("KERNEL_OK")
</pallas_src>

<mosaic_0001>
module attributes {stable_mosaic.version = 11 : i64} {
  func.func @_mse_partial_kernel(%arg0: i32, %arg1: memref<16x128xf32, #tpu.memory_space<vmem>>, %arg2: memref<16x128xf32, #tpu.memory_space<vmem>>, %arg3: memref<8x128xf32, #tpu.memory_space<vmem>>) attributes {dimension_semantics = [#tpu.dimension_semantics<parallel>], iteration_bounds = array<i64: 1>, scalar_prefetch = 0 : i64, scratch_operands = 0 : i64, tpu.core_type = #tpu.core_type<tc>, window_params = [{transform_indices = @transform_0, window_bounds = array<i64: 16, 128>}, {transform_indices = @transform_1, window_bounds = array<i64: 16, 128>}, {transform_indices = @transform_2, window_bounds = array<i64: 8, 128>}]} {
    %c0 = arith.constant 0 : index
    %c0_0 = arith.constant 0 : index
    %0 = vector.load %arg1[%c0, %c0_0] : memref<16x128xf32, #tpu.memory_space<vmem>>, vector<16x128xf32>
    %c0_1 = arith.constant 0 : index
    %c0_2 = arith.constant 0 : index
    %1 = vector.load %arg2[%c0_1, %c0_2] : memref<16x128xf32, #tpu.memory_space<vmem>>, vector<16x128xf32>
    %2 = arith.subf %0, %1 : vector<16x128xf32>
    %3 = arith.mulf %2, %2 : vector<16x128xf32>
    %4 = vector.shape_cast %3 : vector<16x128xf32> to vector<2x8x128xf32>
    %cst = arith.constant dense<0.000000e+00> : vector<8x128xf32>
    %5 = vector.multi_reduction <add>, %4, %cst [0] : vector<2x8x128xf32> to vector<8x128xf32>
    %c0_3 = arith.constant 0 : index
    %c0_4 = arith.constant 0 : index
    %6 = vector.load %arg3[%c0_3, %c0_4] : memref<8x128xf32, #tpu.memory_space<vmem>>, vector<8x128xf32>
    tpu.vector_store %arg3[%c0_3, %c0_4], %5 {strides = array<i32>} : memref<8x128xf32, #tpu.memory_space<vmem>>, vector<8x128xf32>,
    return
  }
  func.func @transform_0(%arg0: i32) -> (i32, i32) {
    %c0_i32 = arith.constant 0 : i32
    %c0_i32_0 = arith.constant 0 : i32
    return %arg0, %c0_i32 : i32, i32
  }
  func.func @transform_1(%arg0: i32) -> (i32, i32) {
    %c0_i32 = arith.constant 0 : i32
    %c0_i32_0 = arith.constant 0 : i32
    return %arg0, %c0_i32 : i32, i32
  }
  func.func @transform_2(%arg0: i32) -> (i32, i32) {
    %c0_i32 = arith.constant 0 : i32
    %c0_i32_0 = arith.constant 0 : i32
    return %arg0, %c0_i32 : i32, i32
  }
}

</mosaic_0001>

<llo_original>
// kernel: sigmoid_mae_loss.1
$region0: #{sigmoid_mae_loss.1}
  #allocation0 [shape = 'u32[]', space=smem, size = 0x4, offset = 0x4, fixed_abs, tag = 'smem constant byte address 0x4 - core index']
  #allocation1 [shape = 'u32[144,128]{1,0:T(1,128)}', space=vmem, size = 0x12000, scoped, tag = 'internal scratch']
  %s0 = inlined_call_operand.vmem [shape: f32[16,128], index: 0, kind: input, shape index: {}]
  %s1 = inlined_call_operand.vmem [shape: f32[16,128], index: 1, kind: input, shape index: {}]
  %s2 = inlined_call_operand.vmem [shape: f32[8,128], index: 2, kind: output, shape index: {}]
  %s3 = sld [smem:[#allocation0]]
  $region18: #{sigmoid_mae_loss.1} parent=0
    _
  %s5 = ssub.s32 1, %s3
  %s6 = scalar_select 0, %s5, %s3
  // Predicated region
  $region2: #{sigmoid_mae_loss.1} parent=0 // pred_check
    _
  $region3: #{sigmoid_mae_loss.1} parent=0 // pred_check_branch
    %8 = sbr.rel (0) target = $region5
  $region4: #{sigmoid_mae_loss.1} parent=0 // pred_region
    _
  $region5: #{sigmoid_mae_loss.1} parent=0 // pred_fallthru
    _
  // Predicated region
  $region6: #{sigmoid_mae_loss.1} parent=0 // pred_check
    _
  $region7: #{sigmoid_mae_loss.1} parent=0 // pred_check_branch
    %10 = sbr.rel (0) target = $region9
  $region8: #{sigmoid_mae_loss.1} parent=0 // pred_region
    _
  $region9: #{sigmoid_mae_loss.1} parent=0 // pred_fallthru
    _
  %v11 = vld [vmem:[%s0] sm:$0xff]
  %v12 = vld [vmem:[%s0 + $0x8] sm:$0xff]
  %v13 = vld [vmem:[%s1] sm:$0xff]
  %v14 = vld [vmem:[%s1 + $0x8] sm:$0xff]
  %v15 = vsub.f32 %v11, %v13
  %v16 = vsub.f32 %v12, %v14
  %v17 = vmul.f32 %v15, %v15
  %v18 = vmul.f32 %v16, %v16
  %v19 = vadd.f32 %v17, %v18
  %20 = vst [vmem:[%s2] sm:$0xff] %v19
  // Predicated region
  $region10: #{sigmoid_mae_loss.1} parent=0 // pred_check
    _
  $region11: #{sigmoid_mae_loss.1} parent=0 // pred_check_branch
    %22 = sbr.rel (0) target = $region13
  $region12: #{sigmoid_mae_loss.1} parent=0 // pred_region
    _
  $region13: #{sigmoid_mae_loss.1} parent=0 // pred_fallthru
    _
  // Predicated region
  $region14: #{sigmoid_mae_loss.1} parent=0 // pred_check
    _
  $region15: #{sigmoid_mae_loss.1} parent=0 // pred_check_branch
    %24 = sbr.rel (0) target = $region17
  $region16: #{sigmoid_mae_loss.1} parent=0 // pred_region
    _
  $region17: #{sigmoid_mae_loss.1} parent=0 // pred_fallthru
    _

</llo_original>
